<compile_context>
chip_gen: v5e
topology: v5e:2x2
jax: 0.10.0
libtpu: 0.0.40
codegen_flags: <defaults>
</compile_context>

<pallas_src>
import math

import jax
import jax.numpy as jnp
from jax.experimental import pallas as pl
from jax.experimental.pallas import tpu as pltpu

# ----------------------------- model dims -----------------------------------
BATCH = 8
INPUT_DIM = 128                 # "input_shape" of TransformModel (small config)
HIDDEN = [128, 64, 32]          # Transform hidden_structure
REP_DIM = 32                    # Transform output dim
EXT_DIM = 22                    # fc1 = Linear(32*2 + 22, 32)
FC1_DIM = 32
OUT_DIM = 4
LANE = 128                      # TPU lane width; every packed block is 128x128

# weight-slab block indices (first axis of the (12, 128, 128) slab)
W_H1, W_H2, W_H3, W_HF = 0, 1, 2, 3       # head tower
W_B1, W_B2, W_B3, W_BF = 4, 5, 6, 7       # body tower
W_FC1_H, W_FC1_B, W_FC1_E, W_FC2 = 8, 9, 10, 11

# bias-slab row indices (rows of the (10, 128) slab)
B_H1, B_H2, B_H3, B_HF = 0, 1, 2, 3
B_B1, B_B2, B_B3, B_BF = 4, 5, 6, 7
B_FC1, B_FC2 = 8, 9
NUM_BIAS_ROWS = 10

NEG_PAD = -1e30                 # masks fc2's padded output lanes in the softmax


# ------------------------------ kernel ---------------------------------------
def transform_model_kernel(xh_ref, xb_ref, ext_ref, w_ref, b_ref, out_ref):
    def dot(x_f32, w_idx):
        # bf16 MXU inputs, f32 accumulation.
        return jnp.dot(x_f32.astype(jnp.bfloat16), w_ref[w_idx],
                       preferred_element_type=jnp.float32)

    def bias(row):
        return b_ref[row:row + 1, :]                      # (1, 128), broadcasts

    def tower(x, w_base, b_base):
        h = x
        for l in range(3):                                # Linear + ReLU x3
            h = jnp.maximum(dot(h, w_base + l) + bias(b_base + l), 0.0)
        return dot(h, w_base + 3) + bias(b_base + 3)      # fc_layer (no act.)

    rep_head = tower(xh_ref[...], W_H1, B_H1)             # (8, 128), cols 32: are 0
    rep_body = tower(xb_ref[...], W_B1, B_B1)

    # fc1 over concat([rep_head, rep_body, external]) == sum of 3 matmuls
    x = (dot(rep_head, W_FC1_H) + dot(rep_body, W_FC1_B)
         + dot(ext_ref[...], W_FC1_E) + bias(B_FC1))
    x = jnp.maximum(x, 0.0)                               # relu
    x = dot(x, W_FC2) + bias(B_FC2)                       # fc2; lanes >=4 == -1e30

    # softmax over the full 128 lanes; padded lanes exp() to exactly 0
    m = jnp.max(x, axis=-1, keepdims=True)
    e = jnp.exp(x - m)
    s = jnp.sum(e, axis=-1, keepdims=True)
    probs = e * pl.reciprocal(s, approx=False)
    out_ref[...] = probs[:, :OUT_DIM]


# --------------------- one-time parameter packing (glue) ----------------------
def pack_params(params):
    """Convert PyTorch-layout params into kernel-ready slabs. Run ONCE at init."""
    def wt(w):                                   # (out, in) -> (in, out)
        return jnp.transpose(w)

    def as_block(w_io):                          # zero-pad (in, out) to (128, 128)
        blk = jnp.zeros((LANE, LANE), jnp.float32)
        return blk.at[:w_io.shape[0], :w_io.shape[1]].set(w_io)

    head, body = params["head"], params["body"]
    blocks = []
    for p in (head, body):
        blocks += [as_block(wt(p["w1"])), as_block(wt(p["w2"])),
                   as_block(wt(p["w3"])), as_block(wt(p["fw"]))]

    fc1_t = wt(params["fc1_w"])                  # (86, 32): [rep_head|rep_body|ext]
    blocks += [as_block(fc1_t[:REP_DIM]),
               as_block(fc1_t[REP_DIM:2 * REP_DIM]),
               as_block(fc1_t[2 * REP_DIM:]),    # (22, 32) zero-padded
               as_block(wt(params["fc2_w"]))]    # (32, 4) zero-padded

    w_slab = jnp.stack(blocks).astype(jnp.bfloat16)        # (12, 128, 128) bf16

    biases = [head["b1"], head["b2"], head["b3"], head["fb"],
              body["b1"], body["b2"], body["b3"], body["fb"],
              params["fc1_b"], params["fc2_b"]]
    b_slab = jnp.zeros((NUM_BIAS_ROWS, LANE), jnp.float32)
    for i, b in enumerate(biases):
        b_slab = b_slab.at[i, :b.shape[0]].set(b)
    # mask fc2's padded output lanes so full-width softmax ignores them
    b_slab = b_slab.at[B_FC2, OUT_DIM:].set(NEG_PAD)

    return dict(w=w_slab, b=b_slab)


# ------------------------------ wrapper ---------------------------------------
@jax.jit
def transform_model(input_head, input_body, external, packed):
    batch = input_head.shape[0]
    # lane-pad external (8, 22) -> (8, 128) so its matmul is fully dense
    ext_p = jnp.zeros((batch, LANE), jnp.float32).at[:, :external.shape[1]].set(external)

    vmem = pl.BlockSpec(memory_space=pltpu.MemorySpace.VMEM)
    return pl.pallas_call(
        transform_model_kernel,
        out_shape=jax.ShapeDtypeStruct((batch, OUT_DIM), jnp.float32),
        in_specs=[vmem] * 5,
        out_specs=vmem,
    )(input_head, input_body, ext_p, packed["w"], packed["b"])
    # NOTE: no grid needed at this size; if BATCH grows, add a 1-D "parallel"
    # batch grid with weight index_maps returning (0, 0, 0) to keep slabs resident.


# --------------------------- param init (deterministic) -----------------------
def _linear_init(key, in_dim, out_dim):
    k = 1.0 / math.sqrt(in_dim)
    kw, kb = jax.random.split(key)
    w = jax.random.uniform(kw, (out_dim, in_dim), jnp.float32, -k, k)  # PyTorch layout
    b = jax.random.uniform(kb, (out_dim,), jnp.float32, -k, k)
    return w, b


def init_params(key, input_dim):
    keys = jax.random.split(key, 12)

    def transform_params(ks):
        w1, b1 = _linear_init(ks[0], input_dim, HIDDEN[0])
        w2, b2 = _linear_init(ks[1], HIDDEN[0], HIDDEN[1])
        w3, b3 = _linear_init(ks[2], HIDDEN[1], HIDDEN[2])
        fw, fb = _linear_init(ks[3], HIDDEN[2], REP_DIM)
        return dict(w1=w1, b1=b1, w2=w2, b2=b2, w3=w3, b3=b3, fw=fw, fb=fb)

    head = transform_params(keys[0:4])
    body = transform_params(keys[4:8])
    fc1_w, fc1_b = _linear_init(keys[8], 2 * REP_DIM + EXT_DIM, FC1_DIM)
    fc2_w, fc2_b = _linear_init(keys[9], FC1_DIM, OUT_DIM)
    return dict(head=head, body=body, fc1_w=fc1_w, fc1_b=fc1_b,
                fc2_w=fc2_w, fc2_b=fc2_b)


# --------------------------- pure-JAX reference --------------------------------
def reference(input_head, input_body, external, params):
    def lin(x, w, b):
        return x @ w.T + b

    def transform(x, p):
        h = jax.nn.relu(lin(x, p["w1"], p["b1"]))
        h = jax.nn.relu(lin(h, p["w2"], p["b2"]))
        h = jax.nn.relu(lin(h, p["w3"], p["b3"]))
        return lin(h, p["fw"], p["fb"])

    rh = transform(input_head, params["head"])
    rb = transform(input_body, params["body"])
    x = jnp.concatenate([rh, rb, external], axis=1)
    x = jax.nn.relu(lin(x, params["fc1_w"], params["fc1_b"]))
    x = lin(x, params["fc2_w"], params["fc2_b"])
    return jax.nn.softmax(x, axis=-1)


# ------------------------------------ main -------------------------------------
if __name__ == "__main__":
    key = jax.random.PRNGKey(0)
    k_in, k_param = jax.random.split(key)
    k_h, k_b, k_e = jax.random.split(k_in, 3)

    input_head = jax.random.normal(k_h, (BATCH, INPUT_DIM), jnp.float32)
    input_body = jax.random.normal(k_b, (BATCH, INPUT_DIM), jnp.float32)
    external = jax.random.normal(k_e, (BATCH, EXT_DIM), jnp.float32)

    params = init_params(k_param, INPUT_DIM)
    packed = pack_params(params)                 # one-time kernel-ready layout
    packed = jax.tree_util.tree_map(jax.block_until_ready, packed)

    out = transform_model(input_head, input_body, external, packed)
    out = jax.block_until_ready(out)

    ref = reference(input_head, input_body, external, params)
    assert out.shape == (BATCH, OUT_DIM)
    # bf16 MXU operands (f32 accumulation) => loosened tolerance vs the f32 reference
    assert jnp.allclose(out, ref, atol=2e-2, rtol=2e-2), "mismatch vs reference"
    assert jnp.allclose(jnp.sum(out, axis=-1), 1.0, atol=1e-5)

    print("KERNEL_OK")
</pallas_src>

<mosaic_0001>
module attributes {stable_mosaic.version = 11 : i64} {
  func.func @transform_model_kernel(%arg0: memref<8x128xf32, #tpu.memory_space<vmem>>, %arg1: memref<8x128xf32, #tpu.memory_space<vmem>>, %arg2: memref<8x128xf32, #tpu.memory_space<vmem>>, %arg3: memref<12x128x128xbf16, #tpu.memory_space<vmem>>, %arg4: memref<10x128xf32, #tpu.memory_space<vmem>>, %arg5: memref<8x4xf32, #tpu.memory_space<vmem>>) attributes {dimension_semantics = [], scalar_prefetch = 0 : i64, scratch_operands = 0 : i64, tpu.core_type = #tpu.core_type<tc>} {
    %c0 = arith.constant 0 : index
    %c0_0 = arith.constant 0 : index
    %0 = vector.load %arg0[%c0, %c0_0] : memref<8x128xf32, #tpu.memory_space<vmem>>, vector<8x128xf32>
    %1 = arith.truncf %0 : vector<8x128xf32> to vector<8x128xbf16>
    %c0_1 = arith.constant 0 : index
    %c0_2 = arith.constant 0 : index
    %c0_3 = arith.constant 0 : index
    %2 = vector.load %arg3[%c0_1, %c0_2, %c0_3] : memref<12x128x128xbf16, #tpu.memory_space<vmem>>, vector<1x128x128xbf16>
    %3 = vector.shape_cast %2 : vector<1x128x128xbf16> to vector<128x128xbf16>
    %cst = arith.constant dense<0.000000e+00> : vector<8x128xf32>
    %4 = tpu.matmul %1, %3, %cst {dimension_numbers = #tpu.dot_dimension_numbers<[1], [0], [0], [1], [0, 0, 1, 1], [], []>} : vector<8x128xbf16>, vector<128x128xbf16>, vector<8x128xf32> -> vector<8x128xf32>
    %c0_4 = arith.constant 0 : index
    %c0_5 = arith.constant 0 : index
    %5 = vector.load %arg4[%c0_4, %c0_5] : memref<10x128xf32, #tpu.memory_space<vmem>>, vector<1x128xf32>
    %6 = vector.broadcast %5 : vector<1x128xf32> to vector<8x128xf32>
    %7 = arith.addf %4, %6 : vector<8x128xf32>
    %cst_6 = arith.constant 0.000000e+00 : f32
    %8 = vector.broadcast %cst_6 : f32 to vector<8x128xf32>
    %9 = arith.maximumf %7, %8 : vector<8x128xf32>
    %10 = arith.truncf %9 : vector<8x128xf32> to vector<8x128xbf16>
    %c1 = arith.constant 1 : index
    %c0_7 = arith.constant 0 : index
    %c0_8 = arith.constant 0 : index
    %11 = vector.load %arg3[%c1, %c0_7, %c0_8] : memref<12x128x128xbf16, #tpu.memory_space<vmem>>, vector<1x128x128xbf16>
    %12 = vector.shape_cast %11 : vector<1x128x128xbf16> to vector<128x128xbf16>
    %cst_9 = arith.constant dense<0.000000e+00> : vector<8x128xf32>
    %13 = tpu.matmul %10, %12, %cst_9 {dimension_numbers = #tpu.dot_dimension_numbers<[1], [0], [0], [1], [0, 0, 1, 1], [], []>} : vector<8x128xbf16>, vector<128x128xbf16>, vector<8x128xf32> -> vector<8x128xf32>
    %c1_10 = arith.constant 1 : index
    %c0_11 = arith.constant 0 : index
    %14 = vector.load %arg4[%c1_10, %c0_11] : memref<10x128xf32, #tpu.memory_space<vmem>>, vector<1x128xf32>
    %15 = vector.broadcast %14 : vector<1x128xf32> to vector<8x128xf32>
    %16 = arith.addf %13, %15 : vector<8x128xf32>
    %cst_12 = arith.constant 0.000000e+00 : f32
    %17 = vector.broadcast %cst_12 : f32 to vector<8x128xf32>
    %18 = arith.maximumf %16, %17 : vector<8x128xf32>
    %19 = arith.truncf %18 : vector<8x128xf32> to vector<8x128xbf16>
    %c2 = arith.constant 2 : index
    %c0_13 = arith.constant 0 : index
    %c0_14 = arith.constant 0 : index
    %20 = vector.load %arg3[%c2, %c0_13, %c0_14] : memref<12x128x128xbf16, #tpu.memory_space<vmem>>, vector<1x128x128xbf16>
    %21 = vector.shape_cast %20 : vector<1x128x128xbf16> to vector<128x128xbf16>
    %cst_15 = arith.constant dense<0.000000e+00> : vector<8x128xf32>
    %22 = tpu.matmul %19, %21, %cst_15 {dimension_numbers = #tpu.dot_dimension_numbers<[1], [0], [0], [1], [0, 0, 1, 1], [], []>} : vector<8x128xbf16>, vector<128x128xbf16>, vector<8x128xf32> -> vector<8x128xf32>
    %c2_16 = arith.constant 2 : index
    %c0_17 = arith.constant 0 : index
    %23 = vector.load %arg4[%c2_16, %c0_17] : memref<10x128xf32, #tpu.memory_space<vmem>>, vector<1x128xf32>
    %24 = vector.broadcast %23 : vector<1x128xf32> to vector<8x128xf32>
    %25 = arith.addf %22, %24 : vector<8x128xf32>
    %cst_18 = arith.constant 0.000000e+00 : f32
    %26 = vector.broadcast %cst_18 : f32 to vector<8x128xf32>
    %27 = arith.maximumf %25, %26 : vector<8x128xf32>
    %28 = arith.truncf %27 : vector<8x128xf32> to vector<8x128xbf16>
    %c3 = arith.constant 3 : index
    %c0_19 = arith.constant 0 : index
    %c0_20 = arith.constant 0 : index
    %29 = vector.load %arg3[%c3, %c0_19, %c0_20] : memref<12x128x128xbf16, #tpu.memory_space<vmem>>, vector<1x128x128xbf16>
    %30 = vector.shape_cast %29 : vector<1x128x128xbf16> to vector<128x128xbf16>
    %cst_21 = arith.constant dense<0.000000e+00> : vector<8x128xf32>
    %31 = tpu.matmul %28, %30, %cst_21 {dimension_numbers = #tpu.dot_dimension_numbers<[1], [0], [0], [1], [0, 0, 1, 1], [], []>} : vector<8x128xbf16>, vector<128x128xbf16>, vector<8x128xf32> -> vector<8x128xf32>
    %c3_22 = arith.constant 3 : index
    %c0_23 = arith.constant 0 : index
    %32 = vector.load %arg4[%c3_22, %c0_23] : memref<10x128xf32, #tpu.memory_space<vmem>>, vector<1x128xf32>
    %33 = vector.broadcast %32 : vector<1x128xf32> to vector<8x128xf32>
    %34 = arith.addf %31, %33 : vector<8x128xf32>
    %c0_24 = arith.constant 0 : index
    %c0_25 = arith.constant 0 : index
    %35 = vector.load %arg1[%c0_24, %c0_25] : memref<8x128xf32, #tpu.memory_space<vmem>>, vector<8x128xf32>
    %36 = arith.truncf %35 : vector<8x128xf32> to vector<8x128xbf16>
    %c4 = arith.constant 4 : index
    %c0_26 = arith.constant 0 : index
    %c0_27 = arith.constant 0 : index
    %37 = vector.load %arg3[%c4, %c0_26, %c0_27] : memref<12x128x128xbf16, #tpu.memory_space<vmem>>, vector<1x128x128xbf16>
    %38 = vector.shape_cast %37 : vector<1x128x128xbf16> to vector<128x128xbf16>
    %cst_28 = arith.constant dense<0.000000e+00> : vector<8x128xf32>
    %39 = tpu.matmul %36, %38, %cst_28 {dimension_numbers = #tpu.dot_dimension_numbers<[1], [0], [0], [1], [0, 0, 1, 1], [], []>} : vector<8x128xbf16>, vector<128x128xbf16>, vector<8x128xf32> -> vector<8x128xf32>
    %c4_29 = arith.constant 4 : index
    %c0_30 = arith.constant 0 : index
    %40 = vector.load %arg4[%c4_29, %c0_30] : memref<10x128xf32, #tpu.memory_space<vmem>>, vector<1x128xf32>
    %41 = vector.broadcast %40 : vector<1x128xf32> to vector<8x128xf32>
    %42 = arith.addf %39, %41 : vector<8x128xf32>
    %cst_31 = arith.constant 0.000000e+00 : f32
    %43 = vector.broadcast %cst_31 : f32 to vector<8x128xf32>
    %44 = arith.maximumf %42, %43 : vector<8x128xf32>
    %45 = arith.truncf %44 : vector<8x128xf32> to vector<8x128xbf16>
    %c5 = arith.constant 5 : index
    %c0_32 = arith.constant 0 : index
    %c0_33 = arith.constant 0 : index
    %46 = vector.load %arg3[%c5, %c0_32, %c0_33] : memref<12x128x128xbf16, #tpu.memory_space<vmem>>, vector<1x128x128xbf16>
    %47 = vector.shape_cast %46 : vector<1x128x128xbf16> to vector<128x128xbf16>
    %cst_34 = arith.constant dense<0.000000e+00> : vector<8x128xf32>
    %48 = tpu.matmul %45, %47, %cst_34 {dimension_numbers = #tpu.dot_dimension_numbers<[1], [0], [0], [1], [0, 0, 1, 1], [], []>} : vector<8x128xbf16>, vector<128x128xbf16>, vector<8x128xf32> -> vector<8x128xf32>
    %c5_35 = arith.constant 5 : index
    %c0_36 = arith.constant 0 : index
    %49 = vector.load %arg4[%c5_35, %c0_36] : memref<10x128xf32, #tpu.memory_space<vmem>>, vector<1x128xf32>
    %50 = vector.broadcast %49 : vector<1x128xf32> to vector<8x128xf32>
    %51 = arith.addf %48, %50 : vector<8x128xf32>
    %cst_37 = arith.constant 0.000000e+00 : f32
    %52 = vector.broadcast %cst_37 : f32 to vector<8x128xf32>
    %53 = arith.maximumf %51, %52 : vector<8x128xf32>
    %54 = arith.truncf %53 : vector<8x128xf32> to vector<8x128xbf16>
    %c6 = arith.constant 6 : index
    %c0_38 = arith.constant 0 : index
    %c0_39 = arith.constant 0 : index
    %55 = vector.load %arg3[%c6, %c0_38, %c0_39] : memref<12x128x128xbf16, #tpu.memory_space<vmem>>, vector<1x128x128xbf16>
    %56 = vector.shape_cast %55 : vector<1x128x128xbf16> to vector<128x128xbf16>
    %cst_40 = arith.constant dense<0.000000e+00> : vector<8x128xf32>
    %57 = tpu.matmul %54, %56, %cst_40 {dimension_numbers = #tpu.dot_dimension_numbers<[1], [0], [0], [1], [0, 0, 1, 1], [], []>} : vector<8x128xbf16>, vector<128x128xbf16>, vector<8x128xf32> -> vector<8x128xf32>
    %c6_41 = arith.constant 6 : index
    %c0_42 = arith.constant 0 : index
    %58 = vector.load %arg4[%c6_41, %c0_42] : memref<10x128xf32, #tpu.memory_space<vmem>>, vector<1x128xf32>
    %59 = vector.broadcast %58 : vector<1x128xf32> to vector<8x128xf32>
    %60 = arith.addf %57, %59 : vector<8x128xf32>
    %cst_43 = arith.constant 0.000000e+00 : f32
    %61 = vector.broadcast %cst_43 : f32 to vector<8x128xf32>
    %62 = arith.maximumf %60, %61 : vector<8x128xf32>
    %63 = arith.truncf %62 : vector<8x128xf32> to vector<8x128xbf16>
    %c7 = arith.constant 7 : index
    %c0_44 = arith.constant 0 : index
    %c0_45 = arith.constant 0 : index
    %64 = vector.load %arg3[%c7, %c0_44, %c0_45] : memref<12x128x128xbf16, #tpu.memory_space<vmem>>, vector<1x128x128xbf16>
    %65 = vector.shape_cast %64 : vector<1x128x128xbf16> to vector<128x128xbf16>
    %cst_46 = arith.constant dense<0.000000e+00> : vector<8x128xf32>
    %66 = tpu.matmul %63, %65, %cst_46 {dimension_numbers = #tpu.dot_dimension_numbers<[1], [0], [0], [1], [0, 0, 1, 1], [], []>} : vector<8x128xbf16>, vector<128x128xbf16>, vector<8x128xf32> -> vector<8x128xf32>
    %c7_47 = arith.constant 7 : index
    %c0_48 = arith.constant 0 : index
    %67 = vector.load %arg4[%c7_47, %c0_48] : memref<10x128xf32, #tpu.memory_space<vmem>>, vector<1x128xf32>
    %68 = vector.broadcast %67 : vector<1x128xf32> to vector<8x128xf32>
    %69 = arith.addf %66, %68 : vector<8x128xf32>
    %70 = arith.truncf %34 : vector<8x128xf32> to vector<8x128xbf16>
    %c8 = arith.constant 8 : index
    %c0_49 = arith.constant 0 : index
    %c0_50 = arith.constant 0 : index
    %71 = vector.load %arg3[%c8, %c0_49, %c0_50] : memref<12x128x128xbf16, #tpu.memory_space<vmem>>, vector<1x128x128xbf16>
    %72 = vector.shape_cast %71 : vector<1x128x128xbf16> to vector<128x128xbf16>
    %cst_51 = arith.constant dense<0.000000e+00> : vector<8x128xf32>
    %73 = tpu.matmul %70, %72, %cst_51 {dimension_numbers = #tpu.dot_dimension_numbers<[1], [0], [0], [1], [0, 0, 1, 1], [], []>} : vector<8x128xbf16>, vector<128x128xbf16>, vector<8x128xf32> -> vector<8x128xf32>
    %74 = arith.truncf %69 : vector<8x128xf32> to vector<8x128xbf16>
    %c9 = arith.constant 9 : index
    %c0_52 = arith.constant 0 : index
    %c0_53 = arith.constant 0 : index
    %75 = vector.load %arg3[%c9, %c0_52, %c0_53] : memref<12x128x128xbf16, #tpu.memory_space<vmem>>, vector<1x128x128xbf16>
    %76 = vector.shape_cast %75 : vector<1x128x128xbf16> to vector<128x128xbf16>
    %cst_54 = arith.constant dense<0.000000e+00> : vector<8x128xf32>
    %77 = tpu.matmul %74, %76, %cst_54 {dimension_numbers = #tpu.dot_dimension_numbers<[1], [0], [0], [1], [0, 0, 1, 1], [], []>} : vector<8x128xbf16>, vector<128x128xbf16>, vector<8x128xf32> -> vector<8x128xf32>
    %78 = arith.addf %73, %77 : vector<8x128xf32>
    %c0_55 = arith.constant 0 : index
    %c0_56 = arith.constant 0 : index
    %79 = vector.load %arg2[%c0_55, %c0_56] : memref<8x128xf32, #tpu.memory_space<vmem>>, vector<8x128xf32>
    %80 = arith.truncf %79 : vector<8x128xf32> to vector<8x128xbf16>
    %c10 = arith.constant 10 : index
    %c0_57 = arith.constant 0 : index
    %c0_58 = arith.constant 0 : index
    %81 = vector.load %arg3[%c10, %c0_57, %c0_58] : memref<12x128x128xbf16, #tpu.memory_space<vmem>>, vector<1x128x128xbf16>
    %82 = vector.shape_cast %81 : vector<1x128x128xbf16> to vector<128x128xbf16>
    %cst_59 = arith.constant dense<0.000000e+00> : vector<8x128xf32>
    %83 = tpu.matmul %80, %82, %cst_59 {dimension_numbers = #tpu.dot_dimension_numbers<[1], [0], [0], [1], [0, 0, 1, 1], [], []>} : vector<8x128xbf16>, vector<128x128xbf16>, vector<8x128xf32> -> vector<8x128xf32>
    %84 = arith.addf %78, %83 : vector<8x128xf32>
    %c8_60 = arith.constant 8 : index
    %c0_61 = arith.constant 0 : index
    %85 = vector.load %arg4[%c8_60, %c0_61] : memref<10x128xf32, #tpu.memory_space<vmem>>, vector<1x128xf32>
    %86 = vector.broadcast %85 : vector<1x128xf32> to vector<8x128xf32>
    %87 = arith.addf %84, %86 : vector<8x128xf32>
    %cst_62 = arith.constant 0.000000e+00 : f32
    %88 = vector.broadcast %cst_62 : f32 to vector<8x128xf32>
    %89 = arith.maximumf %87, %88 : vector<8x128xf32>
    %90 = arith.truncf %89 : vector<8x128xf32> to vector<8x128xbf16>
    %c11 = arith.constant 11 : index
    %c0_63 = arith.constant 0 : index
    %c0_64 = arith.constant 0 : index
    %91 = vector.load %arg3[%c11, %c0_63, %c0_64] : memref<12x128x128xbf16, #tpu.memory_space<vmem>>, vector<1x128x128xbf16>
    %92 = vector.shape_cast %91 : vector<1x128x128xbf16> to vector<128x128xbf16>
    %cst_65 = arith.constant dense<0.000000e+00> : vector<8x128xf32>
    %93 = tpu.matmul %90, %92, %cst_65 {dimension_numbers = #tpu.dot_dimension_numbers<[1], [0], [0], [1], [0, 0, 1, 1], [], []>} : vector<8x128xbf16>, vector<128x128xbf16>, vector<8x128xf32> -> vector<8x128xf32>
    %c9_66 = arith.constant 9 : index
    %c0_67 = arith.constant 0 : index
    %94 = vector.load %arg4[%c9_66, %c0_67] : memref<10x128xf32, #tpu.memory_space<vmem>>, vector<1x128xf32>
    %95 = vector.broadcast %94 : vector<1x128xf32> to vector<8x128xf32>
    %96 = arith.addf %93, %95 : vector<8x128xf32>
    %cst_68 = arith.constant dense<0xFF800000> : vector<8xf32>
    %97 = vector.multi_reduction <maximumf>, %96, %cst_68 [1] : vector<8x128xf32> to vector<8xf32>
    %98 = vector.shape_cast %97 : vector<8xf32> to vector<8x1xf32>
    %99 = vector.broadcast %98 : vector<8x1xf32> to vector<8x128xf32>
    %100 = arith.subf %96, %99 : vector<8x128xf32>
    %101 = math.exp %100 : vector<8x128xf32>
    %cst_69 = arith.constant dense<0.000000e+00> : vector<8xf32>
    %102 = vector.multi_reduction <add>, %101, %cst_69 [1] : vector<8x128xf32> to vector<8xf32>
    %103 = vector.shape_cast %102 : vector<8xf32> to vector<8x1xf32>
    %104 = tpu.reciprocal %103 : vector<8x1xf32> -> vector<8x1xf32>
    %105 = vector.broadcast %104 : vector<8x1xf32> to vector<8x128xf32>
    %106 = arith.mulf %101, %105 : vector<8x128xf32>
    %107 = vector.extract_strided_slice %106 {offsets = [0, 0], sizes = [8, 4], strides = [1, 1]} : vector<8x128xf32> to vector<8x4xf32>
    %c0_70 = arith.constant 0 : index
    %c0_71 = arith.constant 0 : index
    %108 = vector.load %arg5[%c0_70, %c0_71] : memref<8x4xf32, #tpu.memory_space<vmem>>, vector<8x4xf32>
    tpu.vector_store %arg5[%c0_70, %c0_71], %107 {strides = array<i32>} : memref<8x4xf32, #tpu.memory_space<vmem>>, vector<8x4xf32>,
    return
  }
}

</mosaic_0001>

<llo_original>
// kernel: transform_model.1
$region0: #{transform_model.1}
  #allocation0 [shape = 'u32[]', space=smem, size = 0x4, offset = 0x4, fixed_abs, tag = 'smem constant byte address 0x4 - core index']
  #allocation1 [shape = 'u32[72,128]{1,0:T(1,128)}', space=vmem, size = 0x9000, scoped, tag = 'internal scratch']
  %s0 = inlined_call_operand.vmem [shape: f32[8,128], index: 0, kind: input, shape index: {}]
  %s1 = inlined_call_operand.vmem [shape: f32[8,128], index: 1, kind: input, shape index: {}]
  %s2 = inlined_call_operand.vmem [shape: f32[8,128], index: 2, kind: input, shape index: {}]
  %s3 = inlined_call_operand.hbm [shape: bf16[12,128,128], index: 3, kind: input, shape index: {}]
  %s4 = inlined_call_operand.vmem [shape: f32[10,128], index: 4, kind: input, shape index: {}]
  %s5 = inlined_call_operand.vmem [shape: f32[8,4], index: 5, kind: output, shape index: {}]
  %s6 = sld [smem:[#allocation0]]
  $region34: #{transform_model.1} parent=0
    _
  %s8 = ssub.s32 1, %s6
  %s9 = scalar_select 0, %s8, %s6
  $region1: #{transform_model.1} parent=0
    #allocation2 [shape = 'u8[393216]{0}', space=vmem, size = 0x60000, scoped, tag = 'input window, operand 3, single buffered']
    #allocation3 [shape = 's32[1]{0}', space=sflag, size = 0x4, scoped, tag = 'scoped memory for transform_model.1']
    %10 = vsyncpa [#allocation3], 0
    // Predicated region
    $region2: #{transform_model.1} parent=1 // pred_check
      _
    $region3: #{transform_model.1} parent=1 // pred_check_branch
      %12 = sbr.rel (0) target = $region5
    $region4: #{transform_model.1} parent=1 // pred_region
      _
    $region5: #{transform_model.1} parent=1 // pred_fallthru
      _
    // Predicated region
    $region6: #{transform_model.1} parent=1 // pred_check
      _
    $region7: #{transform_model.1} parent=1 // pred_check_branch
      %14 = sbr.rel (0) target = $region9
    $region8: #{transform_model.1} parent=1 // pred_region
      _
    $region9: #{transform_model.1} parent=1 // pred_fallthru
      _
    // Predicated region
    $region10: #{transform_model.1} parent=1 // pred_check
      _
    $region11: #{transform_model.1} parent=1 // pred_check_branch
      %16 = sbr.rel (0) target = $region13
    $region12: #{transform_model.1} parent=1 // pred_region
      _
    $region13: #{transform_model.1} parent=1 // pred_fallthru
      _
    // Predicated region
    $region14: #{transform_model.1} parent=1 // pred_check
      _
    $region15: #{transform_model.1} parent=1 // pred_check_branch
      %18 = sbr.rel (0) target = $region17
    $region16: #{transform_model.1} parent=1 // pred_region
      %20 = vsyncadd [#allocation3], 0
      %s21 = sshll.u32 %s3, 4
      %s22 = int_to_ptr.hbm [resolvable:$true] %s21
      %s23 = sshll.u32 [#allocation2], 4
      %s24 = int_to_ptr.vmem [resolvable:$true] %s23
      %29 = dma.hbm_to_vmem [thread:$0]  %s22, 12288, %s24, [#allocation3], 64, 64, 4
    $region17: #{transform_model.1} parent=1 // pred_fallthru
      _
    // Predicated region
    $region18: #{transform_model.1} parent=1 // pred_check
      _
    $region19: #{transform_model.1} parent=1 // pred_check_branch
      %31 = sbr.rel (0) target = $region21
    $region20: #{transform_model.1} parent=1 // pred_region
      _
    $region21: #{transform_model.1} parent=1 // pred_fallthru
      _
    // Predicated region
    $region22: #{transform_model.1} parent=1 // pred_check
      _
    $region23: #{transform_model.1} parent=1 // pred_check_branch
      %33 = sbr.rel (0) target = $region25
    $region24: #{transform_model.1} parent=1 // pred_region
      %35 = dma.done [#allocation3], 12288
    $region25: #{transform_model.1} parent=1 // pred_fallthru
      _
    %v36 = vld [vmem:[%s0] sm:$0xff]
    %v37 = vpack.c.bf16 %v36, %v36
    %v38 = vld [vmem:[#allocation2] sm:$0xf]
    %v39 = vld [vmem:[#allocation2 + $0x4] sm:$0xf]
    %v40 = vld [vmem:[#allocation2 + $0x8] sm:$0xf]
    %v41 = vld [vmem:[#allocation2 + $0xc] sm:$0xf]
    %v42 = vld [vmem:[#allocation2 + $0x10] sm:$0xf]
    %v43 = vld [vmem:[#allocation2 + $0x14] sm:$0xf]
    %v44 = vld [vmem:[#allocation2 + $0x18] sm:$0xf]
    %v45 = vld [vmem:[#allocation2 + $0x1c] sm:$0xf]
    %v46 = vld [vmem:[#allocation2 + $0x20] sm:$0xf]
    %v47 = vld [vmem:[#allocation2 + $0x24] sm:$0xf]
    %v48 = vld [vmem:[#allocation2 + $0x28] sm:$0xf]
    %v49 = vld [vmem:[#allocation2 + $0x2c] sm:$0xf]
    %v50 = vld [vmem:[#allocation2 + $0x30] sm:$0xf]
    %v51 = vld [vmem:[#allocation2 + $0x34] sm:$0xf]
    %v52 = vld [vmem:[#allocation2 + $0x38] sm:$0xf]
    %v53 = vld [vmem:[#allocation2 + $0x3c] sm:$0xf]
    %v54 = vld [vmem:[%s4] sm:$0x1]
    %v55 = vperm.slane %v54, 0
    %v72 = vunpack.c.l.b16 %v38
    %v73 = vunpack.c.l.b16 %v39
    %v74 = vunpack.c.l.b16 %v40
    %v75 = vunpack.c.l.b16 %v41
    %v76 = vunpack.c.l.b16 %v42
    %v77 = vunpack.c.l.b16 %v43
    %v78 = vunpack.c.l.b16 %v44
    %v79 = vunpack.c.l.b16 %v45
    %v80 = vunpack.c.l.b16 %v46
    %v81 = vunpack.c.l.b16 %v47
    %v82 = vunpack.c.l.b16 %v48
    %v83 = vunpack.c.l.b16 %v49
    %v84 = vunpack.c.l.b16 %v50
    %v85 = vunpack.c.l.b16 %v51
    %v86 = vunpack.c.l.b16 %v52
    %v87 = vunpack.c.l.b16 %v53
    %v88 = vpack.c.b16 %v73, %v72
    %v89 = vpack.c.b16 %v75, %v74
    %v90 = vpack.c.b16 %v77, %v76
    %v91 = vpack.c.b16 %v79, %v78
    %v92 = vpack.c.b16 %v81, %v80
    %v93 = vpack.c.b16 %v83, %v82
    %v94 = vpack.c.b16 %v85, %v84
    %v95 = vpack.c.b16 %v87, %v86
    %104 = vmatpush.bf16.msra.mxu0 %v95
    %105 = vmatpush.bf16.msra.mxu0 %v94
    %106 = vmatpush.bf16.msra.mxu0 %v93
    %107 = vmatpush.bf16.msra.mxu0 %v92
    %108 = vmatpush.bf16.msra.mxu0 %v91
    %109 = vmatpush.bf16.msra.mxu0 %v90
    %110 = vmatpush.bf16.msra.mxu0 %v89
    %111 = vmatpush.bf16.msra.mxu0 %v88
    %112 = vmatmul.bf16.gmra.mxu0 %v37
    %v113 = vpop.f32.mrf.mxu0
    %v114 = vadd.f32 %v55, %v113
    %v115 = vpop.f32.mrf.mxu0
    %116 = vdwg.mxu0
    %v117 = vmax.f32 %v114, 0.0
    %v118 = vpack.c.bf16 %v117, %v117
    %s119 = scalar_lea.vmem [#allocation2], 64
    %v120 = vld [vmem:[%s119] sm:$0xf]
    %v121 = vld [vmem:[%s119 + $0x4] sm:$0xf]
    %v122 = vld [vmem:[%s119 + $0x8] sm:$0xf]
    %v123 = vld [vmem:[%s119 + $0xc] sm:$0xf]
    %v124 = vld [vmem:[%s119 + $0x10] sm:$0xf]
    %v125 = vld [vmem:[%s119 + $0x14] sm:$0xf]
    %v126 = vld [vmem:[%s119 + $0x18] sm:$0xf]
    %v127 = vld [vmem:[%s119 + $0x1c] sm:$0xf]
    %v128 = vld [vmem:[%s119 + $0x20] sm:$0xf]
    %v129 = vld [vmem:[%s119 + $0x24] sm:$0xf]
    %v130 = vld [vmem:[%s119 + $0x28] sm:$0xf]
    %v131 = vld [vmem:[%s119 + $0x2c] sm:$0xf]
    %v132 = vld [vmem:[%s119 + $0x30] sm:$0xf]
    %v133 = vld [vmem:[%s119 + $0x34] sm:$0xf]
    %v134 = vld [vmem:[%s119 + $0x38] sm:$0xf]
    %v135 = vld [vmem:[%s119 + $0x3c] sm:$0xf]
    %v136 = vld [vmem:[%s4 + $0x1] sm:$0x1]
    %v137 = vperm.slane %v136, 0
    %v154 = vunpack.c.l.b16 %v120
    %v155 = vunpack.c.l.b16 %v121
    %v156 = vunpack.c.l.b16 %v122
    %v157 = vunpack.c.l.b16 %v123
    %v158 = vunpack.c.l.b16 %v124
    %v159 = vunpack.c.l.b16 %v125
    %v160 = vunpack.c.l.b16 %v126
    %v161 = vunpack.c.l.b16 %v127
    %v162 = vunpack.c.l.b16 %v128
    %v163 = vunpack.c.l.b16 %v129
    %v164 = vunpack.c.l.b16 %v130
    %v165 = vunpack.c.l.b16 %v131
    %v166 = vunpack.c.l.b16 %v132
    %v167 = vunpack.c.l.b16 %v133
    %v168 = vunpack.c.l.b16 %v134
    %v169 = vunpack.c.l.b16 %v135
    %v170 = vpack.c.b16 %v155, %v154
    %v171 = vpack.c.b16 %v157, %v156
    %v172 = vpack.c.b16 %v159, %v158
    %v173 = vpack.c.b16 %v161, %v160
    %v174 = vpack.c.b16 %v163, %v162
    %v175 = vpack.c.b16 %v165, %v164
    %v176 = vpack.c.b16 %v167, %v166
    %v177 = vpack.c.b16 %v169, %v168
    %186 = vmatpush.bf16.msra.mxu0 %v177
    %187 = vmatpush.bf16.msra.mxu0 %v176
    %188 = vmatpush.bf16.msra.mxu0 %v175
    %189 = vmatpush.bf16.msra.mxu0 %v174
    %190 = vmatpush.bf16.msra.mxu0 %v173
    %191 = vmatpush.bf16.msra.mxu0 %v172
    %192 = vmatpush.bf16.msra.mxu0 %v171
    %193 = vmatpush.bf16.msra.mxu0 %v170
    %194 = vmatmul.bf16.gmra.mxu0 %v118
    %v195 = vpop.f32.mrf.mxu0
    %v196 = vadd.f32 %v137, %v195
    %v197 = vpop.f32.mrf.mxu0
    %198 = vdwg.mxu0
    %v199 = vmax.f32 %v196, 0.0
    %v200 = vpack.c.bf16 %v199, %v199
    %s201 = scalar_lea.vmem [#allocation2], 128
    %v202 = vld [vmem:[%s201] sm:$0xf]
    %v203 = vld [vmem:[%s201 + $0x4] sm:$0xf]
    %v204 = vld [vmem:[%s201 + $0x8] sm:$0xf]
    %v205 = vld [vmem:[%s201 + $0xc] sm:$0xf]
    %v206 = vld [vmem:[%s201 + $0x10] sm:$0xf]
    %v207 = vld [vmem:[%s201 + $0x14] sm:$0xf]
    %v208 = vld [vmem:[%s201 + $0x18] sm:$0xf]
    %v209 = vld [vmem:[%s201 + $0x1c] sm:$0xf]
    %v210 = vld [vmem:[%s201 + $0x20] sm:$0xf]
    %v211 = vld [vmem:[%s201 + $0x24] sm:$0xf]
    %v212 = vld [vmem:[%s201 + $0x28] sm:$0xf]
    %v213 = vld [vmem:[%s201 + $0x2c] sm:$0xf]
    %v214 = vld [vmem:[%s201 + $0x30] sm:$0xf]
    %v215 = vld [vmem:[%s201 + $0x34] sm:$0xf]
    %v216 = vld [vmem:[%s201 + $0x38] sm:$0xf]
    %v217 = vld [vmem:[%s201 + $0x3c] sm:$0xf]
    %v218 = vld [vmem:[%s4 + $0x2] sm:$0x1]
    %v219 = vperm.slane %v218, 0
    %v236 = vunpack.c.l.b16 %v202
    %v237 = vunpack.c.l.b16 %v203
    %v238 = vunpack.c.l.b16 %v204
    %v239 = vunpack.c.l.b16 %v205
    %v240 = vunpack.c.l.b16 %v206
    %v241 = vunpack.c.l.b16 %v207
    %v242 = vunpack.c.l.b16 %v208
    %v243 = vunpack.c.l.b16 %v209
    %v244 = vunpack.c.l.b16 %v210
    %v245 = vunpack.c.l.b16 %v211
    %v246 = vunpack.c.l.b16 %v212
    %v247 = vunpack.c.l.b16 %v213
    %v248 = vunpack.c.l.b16 %v214
    %v249 = vunpack.c.l.b16 %v215
    %v250 = vunpack.c.l.b16 %v216
    %v251 = vunpack.c.l.b16 %v217
    %v252 = vpack.c.b16 %v237, %v236
    %v253 = vpack.c.b16 %v239, %v238
    %v254 = vpack.c.b16 %v241, %v240
    %v255 = vpack.c.b16 %v243, %v242
    %v256 = vpack.c.b16 %v245, %v244
    %v257 = vpack.c.b16 %v247, %v246
    %v258 = vpack.c.b16 %v249, %v248
    %v259 = vpack.c.b16 %v251, %v250
    %268 = vmatpush.bf16.msra.mxu0 %v259
    %269 = vmatpush.bf16.msra.mxu0 %v258
    %270 = vmatpush.bf16.msra.mxu0 %v257
    %271 = vmatpush.bf16.msra.mxu0 %v256
    %272 = vmatpush.bf16.msra.mxu0 %v255
    %273 = vmatpush.bf16.msra.mxu0 %v254
    %274 = vmatpush.bf16.msra.mxu0 %v253
    %275 = vmatpush.bf16.msra.mxu0 %v252
    %276 = vmatmul.bf16.gmra.mxu0 %v200
    %v277 = vpop.f32.mrf.mxu0
    %v278 = vadd.f32 %v219, %v277
    %v279 = vpop.f32.mrf.mxu0
    %280 = vdwg.mxu0
    %v281 = vmax.f32 %v278, 0.0
    %v282 = vpack.c.bf16 %v281, %v281
    %s283 = scalar_lea.vmem [#allocation2], 192
    %v284 = vld [vmem:[%s283] sm:$0xf]
    %v285 = vld [vmem:[%s283 + $0x4] sm:$0xf]
    %v286 = vld [vmem:[%s283 + $0x8] sm:$0xf]
    %v287 = vld [vmem:[%s283 + $0xc] sm:$0xf]
    %v288 = vld [vmem:[%s283 + $0x10] sm:$0xf]
    %v289 = vld [vmem:[%s283 + $0x14] sm:$0xf]
    %v290 = vld [vmem:[%s283 + $0x18] sm:$0xf]
    %v291 = vld [vmem:[%s283 + $0x1c] sm:$0xf]
    %v292 = vld [vmem:[%s283 + $0x20] sm:$0xf]
    %v293 = vld [vmem:[%s283 + $0x24] sm:$0xf]
    %v294 = vld [vmem:[%s283 + $0x28] sm:$0xf]
    %v295 = vld [vmem:[%s283 + $0x2c] sm:$0xf]
    %v296 = vld [vmem:[%s283 + $0x30] sm:$0xf]
    %v297 = vld [vmem:[%s283 + $0x34] sm:$0xf]
    %v298 = vld [vmem:[%s283 + $0x38] sm:$0xf]
    %v299 = vld [vmem:[%s283 + $0x3c] sm:$0xf]
    %v300 = vld [vmem:[%s4 + $0x3] sm:$0x1]
    %v301 = vperm.slane %v300, 0
    %v318 = vunpack.c.l.b16 %v284
    %v319 = vunpack.c.l.b16 %v285
    %v320 = vunpack.c.l.b16 %v286
    %v321 = vunpack.c.l.b16 %v287
    %v322 = vunpack.c.l.b16 %v288
    %v323 = vunpack.c.l.b16 %v289
    %v324 = vunpack.c.l.b16 %v290
    %v325 = vunpack.c.l.b16 %v291
    %v326 = vunpack.c.l.b16 %v292
    %v327 = vunpack.c.l.b16 %v293
    %v328 = vunpack.c.l.b16 %v294
    %v329 = vunpack.c.l.b16 %v295
    %v330 = vunpack.c.l.b16 %v296
    %v331 = vunpack.c.l.b16 %v297
    %v332 = vunpack.c.l.b16 %v298
    %v333 = vunpack.c.l.b16 %v299
    %v334 = vpack.c.b16 %v319, %v318
    %v335 = vpack.c.b16 %v321, %v320
    %v336 = vpack.c.b16 %v323, %v322
    %v337 = vpack.c.b16 %v325, %v324
    %v338 = vpack.c.b16 %v327, %v326
    %v339 = vpack.c.b16 %v329, %v328
    %v340 = vpack.c.b16 %v331, %v330
    %v341 = vpack.c.b16 %v333, %v332
    %350 = vmatpush.bf16.msra.mxu0 %v341
    %351 = vmatpush.bf16.msra.mxu0 %v340
    %352 = vmatpush.bf16.msra.mxu0 %v339
    %353 = vmatpush.bf16.msra.mxu0 %v338
    %354 = vmatpush.bf16.msra.mxu0 %v337
    %355 = vmatpush.bf16.msra.mxu0 %v336
    %356 = vmatpush.bf16.msra.mxu0 %v335
    %357 = vmatpush.bf16.msra.mxu0 %v334
    %358 = vmatmul.bf16.gmra.mxu0 %v282
    %v359 = vpop.f32.mrf.mxu0
    %v360 = vadd.f32 %v301, %v359
    %v361 = vpop.f32.mrf.mxu0
    %362 = vdwg.mxu0
    %v363 = vld [vmem:[%s1] sm:$0xff]
    %v364 = vpack.c.bf16 %v363, %v363
    %s365 = scalar_lea.vmem [#allocation2], 256
    %v366 = vld [vmem:[%s365] sm:$0xf]
    %v367 = vld [vmem:[%s365 + $0x4] sm:$0xf]
    %v368 = vld [vmem:[%s365 + $0x8] sm:$0xf]
    %v369 = vld [vmem:[%s365 + $0xc] sm:$0xf]
    %v370 = vld [vmem:[%s365 + $0x10] sm:$0xf]
    %v371 = vld [vmem:[%s365 + $0x14] sm:$0xf]
    %v372 = vld [vmem:[%s365 + $0x18] sm:$0xf]
    %v373 = vld [vmem:[%s365 + $0x1c] sm:$0xf]
    %v374 = vld [vmem:[%s365 + $0x20] sm:$0xf]
    %v375 = vld [vmem:[%s365 + $0x24] sm:$0xf]
    %v376 = vld [vmem:[%s365 + $0x28] sm:$0xf]
    %v377 = vld [vmem:[%s365 + $0x2c] sm:$0xf]
    %v378 = vld [vmem:[%s365 + $0x30] sm:$0xf]
    %v379 = vld [vmem:[%s365 + $0x34] sm:$0xf]
    %v380 = vld [vmem:[%s365 + $0x38] sm:$0xf]
    %v381 = vld [vmem:[%s365 + $0x3c] sm:$0xf]
    %v382 = vld [vmem:[%s4 + $0x4] sm:$0x1]
    %v383 = vperm.slane %v382, 0
    %v400 = vunpack.c.l.b16 %v366
    %v401 = vunpack.c.l.b16 %v367
    %v402 = vunpack.c.l.b16 %v368
    %v403 = vunpack.c.l.b16 %v369
    %v404 = vunpack.c.l.b16 %v370
    %v405 = vunpack.c.l.b16 %v371
    %v406 = vunpack.c.l.b16 %v372
    %v407 = vunpack.c.l.b16 %v373
    %v408 = vunpack.c.l.b16 %v374
    %v409 = vunpack.c.l.b16 %v375
    %v410 = vunpack.c.l.b16 %v376
    %v411 = vunpack.c.l.b16 %v377
    %v412 = vunpack.c.l.b16 %v378
    %v413 = vunpack.c.l.b16 %v379
    %v414 = vunpack.c.l.b16 %v380
    %v415 = vunpack.c.l.b16 %v381
    %v416 = vpack.c.b16 %v401, %v400
    %v417 = vpack.c.b16 %v403, %v402
    %v418 = vpack.c.b16 %v405, %v404
    %v419 = vpack.c.b16 %v407, %v406
    %v420 = vpack.c.b16 %v409, %v408
    %v421 = vpack.c.b16 %v411, %v410
    %v422 = vpack.c.b16 %v413, %v412
    %v423 = vpack.c.b16 %v415, %v414
    %432 = vmatpush.bf16.msra.mxu0 %v423
    %433 = vmatpush.bf16.msra.mxu0 %v422
    %434 = vmatpush.bf16.msra.mxu0 %v421
    %435 = vmatpush.bf16.msra.mxu0 %v420
    %436 = vmatpush.bf16.msra.mxu0 %v419
    %437 = vmatpush.bf16.msra.mxu0 %v418
    %438 = vmatpush.bf16.msra.mxu0 %v417
    %439 = vmatpush.bf16.msra.mxu0 %v416
    %440 = vmatmul.bf16.gmra.mxu0 %v364
    %v441 = vpop.f32.mrf.mxu0
    %v442 = vadd.f32 %v383, %v441
    %v443 = vpop.f32.mrf.mxu0
    %444 = vdwg.mxu0
    %v445 = vmax.f32 %v442, 0.0
    %v446 = vpack.c.bf16 %v445, %v445
    %s447 = scalar_lea.vmem [#allocation2], 320
    %v448 = vld [vmem:[%s447] sm:$0xf]
    %v449 = vld [vmem:[%s447 + $0x4] sm:$0xf]
    %v450 = vld [vmem:[%s447 + $0x8] sm:$0xf]
    %v451 = vld [vmem:[%s447 + $0xc] sm:$0xf]
    %v452 = vld [vmem:[%s447 + $0x10] sm:$0xf]
    %v453 = vld [vmem:[%s447 + $0x14] sm:$0xf]
    %v454 = vld [vmem:[%s447 + $0x18] sm:$0xf]
    %v455 = vld [vmem:[%s447 + $0x1c] sm:$0xf]
    %v456 = vld [vmem:[%s447 + $0x20] sm:$0xf]
    %v457 = vld [vmem:[%s447 + $0x24] sm:$0xf]
    %v458 = vld [vmem:[%s447 + $0x28] sm:$0xf]
    %v459 = vld [vmem:[%s447 + $0x2c] sm:$0xf]
    %v460 = vld [vmem:[%s447 + $0x30] sm:$0xf]
    %v461 = vld [vmem:[%s447 + $0x34] sm:$0xf]
    %v462 = vld [vmem:[%s447 + $0x38] sm:$0xf]
    %v463 = vld [vmem:[%s447 + $0x3c] sm:$0xf]
    %v464 = vld [vmem:[%s4 + $0x5] sm:$0x1]
    %v465 = vperm.slane %v464, 0
    %v482 = vunpack.c.l.b16 %v448
    %v483 = vunpack.c.l.b16 %v449
    %v484 = vunpack.c.l.b16 %v450
    %v485 = vunpack.c.l.b16 %v451
    %v486 = vunpack.c.l.b16 %v452
    %v487 = vunpack.c.l.b16 %v453
    %v488 = vunpack.c.l.b16 %v454
    %v489 = vunpack.c.l.b16 %v455
    %v490 = vunpack.c.l.b16 %v456
    %v491 = vunpack.c.l.b16 %v457
    %v492 = vunpack.c.l.b16 %v458
    %v493 = vunpack.c.l.b16 %v459
    %v494 = vunpack.c.l.b16 %v460
    %v495 = vunpack.c.l.b16 %v461
    %v496 = vunpack.c.l.b16 %v462
    %v497 = vunpack.c.l.b16 %v463
    %v498 = vpack.c.b16 %v483, %v482
    %v499 = vpack.c.b16 %v485, %v484
    %v500 = vpack.c.b16 %v487, %v486
    %v501 = vpack.c.b16 %v489, %v488
    %v502 = vpack.c.b16 %v491, %v490
    %v503 = vpack.c.b16 %v493, %v492
    %v504 = vpack.c.b16 %v495, %v494
    %v505 = vpack.c.b16 %v497, %v496
    %514 = vmatpush.bf16.msra.mxu0 %v505
    %515 = vmatpush.bf16.msra.mxu0 %v504
    %516 = vmatpush.bf16.msra.mxu0 %v503
    %517 = vmatpush.bf16.msra.mxu0 %v502
    %518 = vmatpush.bf16.msra.mxu0 %v501
    %519 = vmatpush.bf16.msra.mxu0 %v500
    %520 = vmatpush.bf16.msra.mxu0 %v499
    %521 = vmatpush.bf16.msra.mxu0 %v498
    %522 = vmatmul.bf16.gmra.mxu0 %v446
    %v523 = vpop.f32.mrf.mxu0
    %v524 = vadd.f32 %v465, %v523
    %v525 = vpop.f32.mrf.mxu0
    %526 = vdwg.mxu0
    %v527 = vmax.f32 %v524, 0.0
    %v528 = vpack.c.bf16 %v527, %v527
    %s529 = scalar_lea.vmem [#allocation2], 384
    %v530 = vld [vmem:[%s529] sm:$0xf]
    %v531 = vld [vmem:[%s529 + $0x4] sm:$0xf]
    %v532 = vld [vmem:[%s529 + $0x8] sm:$0xf]
    %v533 = vld [vmem:[%s529 + $0xc] sm:$0xf]
    %v534 = vld [vmem:[%s529 + $0x10] sm:$0xf]
    %v535 = vld [vmem:[%s529 + $0x14] sm:$0xf]
    %v536 = vld [vmem:[%s529 + $0x18] sm:$0xf]
    %v537 = vld [vmem:[%s529 + $0x1c] sm:$0xf]
    %v538 = vld [vmem:[%s529 + $0x20] sm:$0xf]
    %v539 = vld [vmem:[%s529 + $0x24] sm:$0xf]
    %v540 = vld [vmem:[%s529 + $0x28] sm:$0xf]
    %v541 = vld [vmem:[%s529 + $0x2c] sm:$0xf]
    %v542 = vld [vmem:[%s529 + $0x30] sm:$0xf]
    %v543 = vld [vmem:[%s529 + $0x34] sm:$0xf]
    %v544 = vld [vmem:[%s529 + $0x38] sm:$0xf]
    %v545 = vld [vmem:[%s529 + $0x3c] sm:$0xf]
    %v546 = vld [vmem:[%s4 + $0x6] sm:$0x1]
    %v547 = vperm.slane %v546, 0
    %v564 = vunpack.c.l.b16 %v530
    %v565 = vunpack.c.l.b16 %v531
    %v566 = vunpack.c.l.b16 %v532
    %v567 = vunpack.c.l.b16 %v533
    %v568 = vunpack.c.l.b16 %v534
    %v569 = vunpack.c.l.b16 %v535
    %v570 = vunpack.c.l.b16 %v536
    %v571 = vunpack.c.l.b16 %v537
    %v572 = vunpack.c.l.b16 %v538
    %v573 = vunpack.c.l.b16 %v539
    %v574 = vunpack.c.l.b16 %v540
    %v575 = vunpack.c.l.b16 %v541
    %v576 = vunpack.c.l.b16 %v542
    %v577 = vunpack.c.l.b16 %v543
    %v578 = vunpack.c.l.b16 %v544
    %v579 = vunpack.c.l.b16 %v545
    %v580 = vpack.c.b16 %v565, %v564
    %v581 = vpack.c.b16 %v567, %v566
    %v582 = vpack.c.b16 %v569, %v568
    %v583 = vpack.c.b16 %v571, %v570
    %v584 = vpack.c.b16 %v573, %v572
    %v585 = vpack.c.b16 %v575, %v574
    %v586 = vpack.c.b16 %v577, %v576
    %v587 = vpack.c.b16 %v579, %v578
    %596 = vmatpush.bf16.msra.mxu0 %v587
    %597 = vmatpush.bf16.msra.mxu0 %v586
    %598 = vmatpush.bf16.msra.mxu0 %v585
    %599 = vmatpush.bf16.msra.mxu0 %v584
    %600 = vmatpush.bf16.msra.mxu0 %v583
    %601 = vmatpush.bf16.msra.mxu0 %v582
    %602 = vmatpush.bf16.msra.mxu0 %v581
    %603 = vmatpush.bf16.msra.mxu0 %v580
    %604 = vmatmul.bf16.gmra.mxu0 %v528
    %v605 = vpop.f32.mrf.mxu0
    %v606 = vadd.f32 %v547, %v605
    %v607 = vpop.f32.mrf.mxu0
    %608 = vdwg.mxu0
    %v609 = vmax.f32 %v606, 0.0
    %v610 = vpack.c.bf16 %v609, %v609
    %s611 = scalar_lea.vmem [#allocation2], 448
    %v612 = vld [vmem:[%s611] sm:$0xf]
    %v613 = vld [vmem:[%s611 + $0x4] sm:$0xf]
    %v614 = vld [vmem:[%s611 + $0x8] sm:$0xf]
    %v615 = vld [vmem:[%s611 + $0xc] sm:$0xf]
    %v616 = vld [vmem:[%s611 + $0x10] sm:$0xf]
    %v617 = vld [vmem:[%s611 + $0x14] sm:$0xf]
    %v618 = vld [vmem:[%s611 + $0x18] sm:$0xf]
    %v619 = vld [vmem:[%s611 + $0x1c] sm:$0xf]
    %v620 = vld [vmem:[%s611 + $0x20] sm:$0xf]
    %v621 = vld [vmem:[%s611 + $0x24] sm:$0xf]
    %v622 = vld [vmem:[%s611 + $0x28] sm:$0xf]
    %v623 = vld [vmem:[%s611 + $0x2c] sm:$0xf]
    %v624 = vld [vmem:[%s611 + $0x30] sm:$0xf]
    %v625 = vld [vmem:[%s611 + $0x34] sm:$0xf]
    %v626 = vld [vmem:[%s611 + $0x38] sm:$0xf]
    %v627 = vld [vmem:[%s611 + $0x3c] sm:$0xf]
    %v628 = vld [vmem:[%s4 + $0x7] sm:$0x1]
    %v629 = vperm.slane %v628, 0
    %v646 = vunpack.c.l.b16 %v612
    %v647 = vunpack.c.l.b16 %v613
    %v648 = vunpack.c.l.b16 %v614
    %v649 = vunpack.c.l.b16 %v615
    %v650 = vunpack.c.l.b16 %v616
    %v651 = vunpack.c.l.b16 %v617
    %v652 = vunpack.c.l.b16 %v618
    %v653 = vunpack.c.l.b16 %v619
    %v654 = vunpack.c.l.b16 %v620
    %v655 = vunpack.c.l.b16 %v621
    %v656 = vunpack.c.l.b16 %v622
    %v657 = vunpack.c.l.b16 %v623
    %v658 = vunpack.c.l.b16 %v624
    %v659 = vunpack.c.l.b16 %v625
    %v660 = vunpack.c.l.b16 %v626
    %v661 = vunpack.c.l.b16 %v627
    %v662 = vpack.c.b16 %v647, %v646
    %v663 = vpack.c.b16 %v649, %v648
    %v664 = vpack.c.b16 %v651, %v650
    %v665 = vpack.c.b16 %v653, %v652
    %v666 = vpack.c.b16 %v655, %v654
    %v667 = vpack.c.b16 %v657, %v656
    %v668 = vpack.c.b16 %v659, %v658
    %v669 = vpack.c.b16 %v661, %v660
    %678 = vmatpush.bf16.msra.mxu0 %v669
    %679 = vmatpush.bf16.msra.mxu0 %v668
    %680 = vmatpush.bf16.msra.mxu0 %v667
    %681 = vmatpush.bf16.msra.mxu0 %v666
    %682 = vmatpush.bf16.msra.mxu0 %v665
    %683 = vmatpush.bf16.msra.mxu0 %v664
    %684 = vmatpush.bf16.msra.mxu0 %v663
    %685 = vmatpush.bf16.msra.mxu0 %v662
    %686 = vmatmul.bf16.gmra.mxu0 %v610
    %v687 = vpop.f32.mrf.mxu0
    %v688 = vadd.f32 %v629, %v687
    %v689 = vpop.f32.mrf.mxu0
    %690 = vdwg.mxu0
    %v691 = vpack.c.bf16 %v360, %v360
    %s692 = scalar_lea.vmem [#allocation2], 512
    %v693 = vld [vmem:[%s692] sm:$0xf]
    %v694 = vld [vmem:[%s692 + $0x4] sm:$0xf]
    %v695 = vld [vmem:[%s692 + $0x8] sm:$0xf]
    %v696 = vld [vmem:[%s692 + $0xc] sm:$0xf]
    %v697 = vld [vmem:[%s692 + $0x10] sm:$0xf]
    %v698 = vld [vmem:[%s692 + $0x14] sm:$0xf]
    %v699 = vld [vmem:[%s692 + $0x18] sm:$0xf]
    %v700 = vld [vmem:[%s692 + $0x1c] sm:$0xf]
    %v701 = vld [vmem:[%s692 + $0x20] sm:$0xf]
    %v702 = vld [vmem:[%s692 + $0x24] sm:$0xf]
    %v703 = vld [vmem:[%s692 + $0x28] sm:$0xf]
    %v704 = vld [vmem:[%s692 + $0x2c] sm:$0xf]
    %v705 = vld [vmem:[%s692 + $0x30] sm:$0xf]
    %v706 = vld [vmem:[%s692 + $0x34] sm:$0xf]
    %v707 = vld [vmem:[%s692 + $0x38] sm:$0xf]
    %v708 = vld [vmem:[%s692 + $0x3c] sm:$0xf]
    %v709 = vpack.c.bf16 %v688, %v688
    %s710 = scalar_lea.vmem [#allocation2], 576
    %v711 = vld [vmem:[%s710] sm:$0xf]
    %v712 = vld [vmem:[%s710 + $0x4] sm:$0xf]
    %v713 = vld [vmem:[%s710 + $0x8] sm:$0xf]
    %v714 = vld [vmem:[%s710 + $0xc] sm:$0xf]
    %v715 = vld [vmem:[%s710 + $0x10] sm:$0xf]
    %v716 = vld [vmem:[%s710 + $0x14] sm:$0xf]
    %v717 = vld [vmem:[%s710 + $0x18] sm:$0xf]
    %v718 = vld [vmem:[%s710 + $0x1c] sm:$0xf]
    %v719 = vld [vmem:[%s710 + $0x20] sm:$0xf]
    %v720 = vld [vmem:[%s710 + $0x24] sm:$0xf]
    %v721 = vld [vmem:[%s710 + $0x28] sm:$0xf]
    %v722 = vld [vmem:[%s710 + $0x2c] sm:$0xf]
    %v723 = vld [vmem:[%s710 + $0x30] sm:$0xf]
    %v724 = vld [vmem:[%s710 + $0x34] sm:$0xf]
    %v725 = vld [vmem:[%s710 + $0x38] sm:$0xf]
    %v726 = vld [vmem:[%s710 + $0x3c] sm:$0xf]
    %v743 = vunpack.c.l.b16 %v711
    %v744 = vunpack.c.l.b16 %v712
    %v745 = vunpack.c.l.b16 %v713
    %v746 = vunpack.c.l.b16 %v714
    %v747 = vunpack.c.l.b16 %v715
    %v748 = vunpack.c.l.b16 %v716
    %v749 = vunpack.c.l.b16 %v717
    %v750 = vunpack.c.l.b16 %v718
    %v751 = vunpack.c.l.b16 %v719
    %v752 = vunpack.c.l.b16 %v720
    %v753 = vunpack.c.l.b16 %v721
    %v754 = vunpack.c.l.b16 %v722
    %v755 = vunpack.c.l.b16 %v723
    %v756 = vunpack.c.l.b16 %v724
    %v757 = vunpack.c.l.b16 %v725
    %v758 = vunpack.c.l.b16 %v726
    %v759 = vpack.c.b16 %v744, %v743
    %v760 = vpack.c.b16 %v746, %v745
    %v761 = vpack.c.b16 %v748, %v747
    %v762 = vpack.c.b16 %v750, %v749
    %v763 = vpack.c.b16 %v752, %v751
    %v764 = vpack.c.b16 %v754, %v753
    %v765 = vpack.c.b16 %v756, %v755
    %v766 = vpack.c.b16 %v758, %v757
    %775 = vmatpush.bf16.msra.mxu0 %v766
    %776 = vmatpush.bf16.msra.mxu0 %v765
    %777 = vmatpush.bf16.msra.mxu0 %v764
    %778 = vmatpush.bf16.msra.mxu0 %v763
    %779 = vmatpush.bf16.msra.mxu0 %v762
    %780 = vmatpush.bf16.msra.mxu0 %v761
    %781 = vmatpush.bf16.msra.mxu0 %v760
    %782 = vmatpush.bf16.msra.mxu0 %v759
    %783 = vmatmul.bf16.gmra.mxu0 %v709
    %v784 = vpop.f32.mrf.mxu0
    %v785 = vadd.f32 0.0, %v784
    %v786 = vpop.f32.mrf.mxu0
    %787 = vdwg.mxu0
    %v804 = vunpack.c.l.b16 %v693
    %v805 = vunpack.c.l.b16 %v694
    %v806 = vunpack.c.l.b16 %v695
    %v807 = vunpack.c.l.b16 %v696
    %v808 = vunpack.c.l.b16 %v697
    %v809 = vunpack.c.l.b16 %v698
    %v810 = vunpack.c.l.b16 %v699
    %v811 = vunpack.c.l.b16 %v700
    %v812 = vunpack.c.l.b16 %v701
    %v813 = vunpack.c.l.b16 %v702
    %v814 = vunpack.c.l.b16 %v703
    %v815 = vunpack.c.l.b16 %v704
    %v816 = vunpack.c.l.b16 %v705
    %v817 = vunpack.c.l.b16 %v706
    %v818 = vunpack.c.l.b16 %v707
    %v819 = vunpack.c.l.b16 %v708
    %v820 = vpack.c.b16 %v805, %v804
    %v821 = vpack.c.b16 %v807, %v806
    %v822 = vpack.c.b16 %v809, %v808
    %v823 = vpack.c.b16 %v811, %v810
    %v824 = vpack.c.b16 %v813, %v812
    %v825 = vpack.c.b16 %v815, %v814
    %v826 = vpack.c.b16 %v817, %v816
    %v827 = vpack.c.b16 %v819, %v818
    %836 = vmatpush.bf16.msra.mxu0 %v827
    %837 = vmatpush.bf16.msra.mxu0 %v826
    %838 = vmatpush.bf16.msra.mxu0 %v825
    %839 = vmatpush.bf16.msra.mxu0 %v824
    %840 = vmatpush.bf16.msra.mxu0 %v823
    %841 = vmatpush.bf16.msra.mxu0 %v822
    %842 = vmatpush.bf16.msra.mxu0 %v821
    %843 = vmatpush.bf16.msra.mxu0 %v820
    %844 = vmatmul.bf16.gmra.mxu0 %v691
    %v845 = vpop.f32.mrf.mxu0
    %v846 = vadd.f32 %v785, %v845
    %v847 = vpop.f32.mrf.mxu0
    %848 = vdwg.mxu0
    %v849 = vld [vmem:[%s2] sm:$0xff]
    %v850 = vpack.c.bf16 %v849, %v849
    %s851 = scalar_lea.vmem [#allocation2], 640
    %v852 = vld [vmem:[%s851] sm:$0xf]
    %v853 = vld [vmem:[%s851 + $0x4] sm:$0xf]
    %v854 = vld [vmem:[%s851 + $0x8] sm:$0xf]
    %v855 = vld [vmem:[%s851 + $0xc] sm:$0xf]
    %v856 = vld [vmem:[%s851 + $0x10] sm:$0xf]
    %v857 = vld [vmem:[%s851 + $0x14] sm:$0xf]
    %v858 = vld [vmem:[%s851 + $0x18] sm:$0xf]
    %v859 = vld [vmem:[%s851 + $0x1c] sm:$0xf]
    %v860 = vld [vmem:[%s851 + $0x20] sm:$0xf]
    %v861 = vld [vmem:[%s851 + $0x24] sm:$0xf]
    %v862 = vld [vmem:[%s851 + $0x28] sm:$0xf]
    %v863 = vld [vmem:[%s851 + $0x2c] sm:$0xf]
    %v864 = vld [vmem:[%s851 + $0x30] sm:$0xf]
    %v865 = vld [vmem:[%s851 + $0x34] sm:$0xf]
    %v866 = vld [vmem:[%s851 + $0x38] sm:$0xf]
    %v867 = vld [vmem:[%s851 + $0x3c] sm:$0xf]
    %v884 = vunpack.c.l.b16 %v852
    %v885 = vunpack.c.l.b16 %v853
    %v886 = vunpack.c.l.b16 %v854
    %v887 = vunpack.c.l.b16 %v855
    %v888 = vunpack.c.l.b16 %v856
    %v889 = vunpack.c.l.b16 %v857
    %v890 = vunpack.c.l.b16 %v858
    %v891 = vunpack.c.l.b16 %v859
    %v892 = vunpack.c.l.b16 %v860
    %v893 = vunpack.c.l.b16 %v861
    %v894 = vunpack.c.l.b16 %v862
    %v895 = vunpack.c.l.b16 %v863
    %v896 = vunpack.c.l.b16 %v864
    %v897 = vunpack.c.l.b16 %v865
    %v898 = vunpack.c.l.b16 %v866
    %v899 = vunpack.c.l.b16 %v867
    %v900 = vpack.c.b16 %v885, %v884
    %v901 = vpack.c.b16 %v887, %v886
    %v902 = vpack.c.b16 %v889, %v888
    %v903 = vpack.c.b16 %v891, %v890
    %v904 = vpack.c.b16 %v893, %v892
    %v905 = vpack.c.b16 %v895, %v894
    %v906 = vpack.c.b16 %v897, %v896
    %v907 = vpack.c.b16 %v899, %v898
    %916 = vmatpush.bf16.msra.mxu0 %v907
    %917 = vmatpush.bf16.msra.mxu0 %v906
    %918 = vmatpush.bf16.msra.mxu0 %v905
    %919 = vmatpush.bf16.msra.mxu0 %v904
    %920 = vmatpush.bf16.msra.mxu0 %v903
    %921 = vmatpush.bf16.msra.mxu0 %v902
    %922 = vmatpush.bf16.msra.mxu0 %v901
    %923 = vmatpush.bf16.msra.mxu0 %v900
    %924 = vmatmul.bf16.gmra.mxu0 %v850
    %v925 = vpop.f32.mrf.mxu0
    %v926 = vadd.f32 0.0, %v925
    %v927 = vpop.f32.mrf.mxu0
    %928 = vdwg.mxu0
    %v929 = vadd.f32 %v846, %v926
    %v930 = vld [vmem:[%s4 + $0x8] sm:$0x1]
    %v931 = vperm.slane %v930, 0
    %v932 = vadd.f32 %v929, %v931
    %v933 = vmax.f32 %v932, 0.0
    %v934 = vpack.c.bf16 %v933, %v933
    %s935 = scalar_lea.vmem [#allocation2], 704
    %v936 = vld [vmem:[%s935] sm:$0xf]
    %v937 = vld [vmem:[%s935 + $0x4] sm:$0xf]
    %v938 = vld [vmem:[%s935 + $0x8] sm:$0xf]
    %v939 = vld [vmem:[%s935 + $0xc] sm:$0xf]
    %v940 = vld [vmem:[%s935 + $0x10] sm:$0xf]
    %v941 = vld [vmem:[%s935 + $0x14] sm:$0xf]
    %v942 = vld [vmem:[%s935 + $0x18] sm:$0xf]
    %v943 = vld [vmem:[%s935 + $0x1c] sm:$0xf]
    %v944 = vld [vmem:[%s935 + $0x20] sm:$0xf]
    %v945 = vld [vmem:[%s935 + $0x24] sm:$0xf]
    %v946 = vld [vmem:[%s935 + $0x28] sm:$0xf]
    %v947 = vld [vmem:[%s935 + $0x2c] sm:$0xf]
    %v948 = vld [vmem:[%s935 + $0x30] sm:$0xf]
    %v949 = vld [vmem:[%s935 + $0x34] sm:$0xf]
    %v950 = vld [vmem:[%s935 + $0x38] sm:$0xf]
    %v951 = vld [vmem:[%s935 + $0x3c] sm:$0xf]
    %v952 = vld [vmem:[%s4 + $0x9] sm:$0x1]
    %v953 = vperm.slane %v952, 0
    %v970 = vunpack.c.l.b16 %v936
    %v971 = vunpack.c.l.b16 %v937
    %v972 = vunpack.c.l.b16 %v938
    %v973 = vunpack.c.l.b16 %v939
    %v974 = vunpack.c.l.b16 %v940
    %v975 = vunpack.c.l.b16 %v941
    %v976 = vunpack.c.l.b16 %v942
    %v977 = vunpack.c.l.b16 %v943
    %v978 = vunpack.c.l.b16 %v944
    %v979 = vunpack.c.l.b16 %v945
    %v980 = vunpack.c.l.b16 %v946
    %v981 = vunpack.c.l.b16 %v947
    %v982 = vunpack.c.l.b16 %v948
    %v983 = vunpack.c.l.b16 %v949
    %v984 = vunpack.c.l.b16 %v950
    %v985 = vunpack.c.l.b16 %v951
    %v986 = vpack.c.b16 %v971, %v970
    %v987 = vpack.c.b16 %v973, %v972
    %v988 = vpack.c.b16 %v975, %v974
    %v989 = vpack.c.b16 %v977, %v976
    %v990 = vpack.c.b16 %v979, %v978
    %v991 = vpack.c.b16 %v981, %v980
    %v992 = vpack.c.b16 %v983, %v982
    %v993 = vpack.c.b16 %v985, %v984
    %1002 = vmatpush.bf16.msra.mxu0 %v993
    %1003 = vmatpush.bf16.msra.mxu0 %v992
    %1004 = vmatpush.bf16.msra.mxu0 %v991
    %1005 = vmatpush.bf16.msra.mxu0 %v990
    %1006 = vmatpush.bf16.msra.mxu0 %v989
    %1007 = vmatpush.bf16.msra.mxu0 %v988
    %1008 = vmatpush.bf16.msra.mxu0 %v987
    %1009 = vmatpush.bf16.msra.mxu0 %v986
    %1010 = vmatmul.bf16.gmra.mxu0 %v934
    %v1011 = vpop.f32.mrf.mxu0
    %v1012 = vadd.f32 %v953, %v1011
    %v1013 = vpop.f32.mrf.mxu0
    %1014 = vdwg.mxu0
    %1015 = vmax.xlane.f32.xlu0 %v1012
    %v1016 = vpop.xlane.xlu0 %1015
    %v1017 = vsub.f32 %v1012, %v1016
    %v1018 = vmul.f32 %v1017, 1.442695
    %v1019 = vpow.pop %v1018
    %1020 = vadd.xlane.f32.xlu0 %v1019
    %v1021 = vpop.xlane.xlu0 %1020
    %v1022 = vrcp.pop %v1021
    %v1023 = vmul.f32 %v1021, %v1022
    %v1024 = vsub.f32 1.0, %v1023
    %v1025 = vmul.f32 %v1022, %v1024
    %v1026 = vadd.f32 %v1022, %v1025
    %vm1027 = vweird.f32 %v1021
    %vm1028 = vweird.f32 %v1022
    %vm1029 = vmor %vm1027, %vm1028
    %v1030 = vsel %vm1029, %v1022, %v1026
    %v1031 = vand.u32 2147483647, %v1021
    %vm1032 = vcmp.eq.f32.partialorder %v1031, 8.507059e+37
    %v1033 = vand.u32 %v1021, 2147483648
    %v1034 = vor.u32 1.1754944e-38, %v1033
    %v1035 = vsel %vm1032, %v1034, %v1030
    %v1036 = vmul.f32 %v1019, %v1035
    %vm1037 = vcmask 31744
    %1038 = vst.msk [vmem:[%s5] sm:$0xff] %vm1037, %v1036
    // Predicated region
    $region26: #{transform_model.1} parent=1 // pred_check
      _
    $region27: #{transform_model.1} parent=1 // pred_check_branch
      %1040 = sbr.rel (0) target = $region29
    $region28: #{transform_model.1} parent=1 // pred_region
      _
    $region29: #{transform_model.1} parent=1 // pred_fallthru
      _
    // Predicated region
    $region30: #{transform_model.1} parent=1 // pred_check
      _
    $region31: #{transform_model.1} parent=1 // pred_check_branch
      %1042 = sbr.rel (0) target = $region33
    $region32: #{transform_model.1} parent=1 // pred_region
      _
    $region33: #{transform_model.1} parent=1 // pred_fallthru
      _
    %1043 = vsyncpa [#allocation3], 1

</llo_original>
